<compile_context>
chip_gen: v6e
topology: v6e:2x2x1
jax: 0.10.0
libtpu: 0.0.40
codegen_flags: <defaults>
</compile_context>

<pallas_src>
import functools

import jax
import jax.numpy as jnp
from jax.experimental import pallas as pl
from jax.experimental.pallas import tpu as pltpu

EPS = 1e-5
_LANE = 128


def _round_up(v, m):
    return (v + m - 1) // m * m


def _fused_kernel(x_ref, w1_ref, g1_ref, be1_ref, w3_ref, o_ref, h_ref):
    """Grid = (out_dim tiles,).  Step 0 additionally materializes layer1.

    x_ref  : [B, Kp]  bf16   (block index constant -> DMA'd once)
    w1_ref : [Kp, Hp] bf16   (block index constant -> DMA'd once)
    g1_ref, be1_ref : [1, Hp] f32 BN affine for layer1
    w3_ref : [Hp, tn] bf16   (per-step out-dim tile)
    o_ref  : [B, tn]  f32
    h_ref  : [B, Hp]  bf16 VMEM scratch, persists across grid steps
    """
    @pl.when(pl.program_id(0) == 0)
    def _layer1():
        h = jnp.dot(x_ref[...], w1_ref[...], preferred_element_type=jnp.float32)
        mean = jnp.mean(h, axis=0, keepdims=True)
        d = h - mean
        var = jnp.mean(d * d, axis=0, keepdims=True)          # biased variance
        scale = g1_ref[...] * jax.lax.rsqrt(var + EPS)         # fold BN affine
        shift = be1_ref[...] - mean * scale
        h_ref[...] = jnp.maximum(h * scale + shift, 0.0).astype(h_ref.dtype)

    # layer3: Linear (no bias) -> BatchNorm1d(affine=False) on one out tile.
    y = jnp.dot(h_ref[...], w3_ref[...], preferred_element_type=jnp.float32)
    mean = jnp.mean(y, axis=0, keepdims=True)
    d = y - mean
    var = jnp.mean(d * d, axis=0, keepdims=True)
    o_ref[...] = (d * jax.lax.rsqrt(var + EPS)).astype(o_ref.dtype)


def prepare_params(w1, b1, g1, be1, w3, b3):
    """One-time parameter prep: drop Linear biases (cancel under training-mode
    BN), pad all feature dims to 128-lane multiples, cast MXU operands to bf16.

    w1: [in_dim, hidden]  w3: [hidden, out_dim]  (already transposed vs torch)
    Returns (prepared_tuple, out_dim).
    """
    del b1, b3  # cancel exactly under training-mode BatchNorm
    K, H = w1.shape
    H2, N = w3.shape
    assert H2 == H, (H2, H)
    Kp, Hp, Np = _round_up(K, _LANE), _round_up(H, _LANE), _round_up(N, _LANE)

    w1_p = jnp.pad(w1, ((0, Kp - K), (0, Hp - H))).astype(jnp.bfloat16)
    w3_p = jnp.pad(w3, ((0, Hp - H), (0, Np - N))).astype(jnp.bfloat16)
    g1_p = jnp.pad(g1.reshape(1, -1).astype(jnp.float32),
                   ((0, 0), (0, Hp - H)), constant_values=1.0)
    be1_p = jnp.pad(be1.reshape(1, -1).astype(jnp.float32),
                    ((0, 0), (0, Hp - H)))
    return (w1_p, g1_p, be1_p, w3_p), N


@functools.partial(jax.jit, static_argnames=("out_dim", "tn"))
def projection_mlp_forward(x, prepared, *, out_dim, tn=512):
    """x: [B, in_dim] -> [B, out_dim].  Fused 2-layer projection MLP."""
    w1_p, g1_p, be1_p, w3_p = prepared
    Kp, Hp = w1_p.shape
    Np = w3_p.shape[1]
    B, K = x.shape

    if K != Kp:                                   # no-op when in_dim % 128 == 0
        x = jnp.pad(x, ((0, 0), (0, Kp - K)))
    x = x.astype(jnp.bfloat16)

    # Lane-dense out tile that divides the padded out dim (Np % 128 == 0).
    tn_ = min(tn, Np)
    while Np % tn_:
        tn_ -= _LANE

    out = pl.pallas_call(
        _fused_kernel,
        out_shape=jax.ShapeDtypeStruct((B, Np), jnp.float32),
        grid=(Np // tn_,),
        in_specs=[
            pl.BlockSpec((B, Kp), lambda j: (0, 0)),    # x   (resident)
            pl.BlockSpec((Kp, Hp), lambda j: (0, 0)),   # W1  (resident)
            pl.BlockSpec((1, Hp), lambda j: (0, 0)),    # BN gamma (layer1)
            pl.BlockSpec((1, Hp), lambda j: (0, 0)),    # BN beta  (layer1)
            pl.BlockSpec((Hp, tn_), lambda j: (0, j)),  # W3 out-dim tile
        ],
        out_specs=pl.BlockSpec((B, tn_), lambda j: (0, j)),
        scratch_shapes=[pltpu.VMEM((B, Hp), jnp.bfloat16)],   # resident h
        compiler_params=pltpu.CompilerParams(
            # Sequential: later out tiles read the h scratch written at j == 0.
            dimension_semantics=("arbitrary",),
            vmem_limit_bytes=32 * 1024 * 1024),
    )(x, w1_p, g1_p, be1_p, w3_p)

    if Np != out_dim:                              # no-op when out_dim % 128 == 0
        out = out[:, :out_dim]
    return out


def init_params(key, in_dim, hidden_dim, out_dim):
    """Deterministic parameter init (PyTorch-style uniform fan-in bounds)."""
    k1, k2, k3, k4 = jax.random.split(key, 4)
    lim1 = 1.0 / (in_dim ** 0.5)
    lim3 = 1.0 / (hidden_dim ** 0.5)
    w1 = jax.random.uniform(k1, (in_dim, hidden_dim), jnp.float32, -lim1, lim1)
    b1 = jax.random.uniform(k2, (1, hidden_dim), jnp.float32, -lim1, lim1)
    g1 = jnp.ones((hidden_dim,), jnp.float32)       # BatchNorm1d weight
    be1 = jnp.zeros((hidden_dim,), jnp.float32)     # BatchNorm1d bias
    w3 = jax.random.uniform(k3, (hidden_dim, out_dim), jnp.float32, -lim3, lim3)
    b3 = jax.random.uniform(k4, (1, out_dim), jnp.float32, -lim3, lim3)
    return (w1, b1, g1, be1, w3, b3)


def reference_forward(x, raw_params):
    """Pure-JAX reference mirroring the PyTorch forward (biases included,
    training-mode BN) at the kernel's MXU precision (bf16 operands, f32 acc)."""
    w1, b1, g1, be1, w3, b3 = raw_params

    def mm(a, b):
        return jnp.dot(a.astype(jnp.bfloat16), b.astype(jnp.bfloat16),
                       preferred_element_type=jnp.float32)

    h = mm(x, w1) + b1
    m = h.mean(0, keepdims=True)
    v = ((h - m) ** 2).mean(0, keepdims=True)
    h = (h - m) / jnp.sqrt(v + EPS) * g1.reshape(1, -1) + be1.reshape(1, -1)
    h = jnp.maximum(h, 0.0)

    y = mm(h, w3) + b3
    m = y.mean(0, keepdims=True)
    v = ((y - m) ** 2).mean(0, keepdims=True)
    return (y - m) / jnp.sqrt(v + EPS)


if __name__ == "__main__":
    key = jax.random.PRNGKey(0)
    kx, kp = jax.random.split(key)

    # Small, lane-aligned shapes so no runtime padding / slicing ops appear.
    B, in_dim, hidden_dim, out_dim = 64, 128, 256, 128
    x = jax.random.normal(kx, (B, in_dim), jnp.float32)
    raw_params = init_params(kp, in_dim, hidden_dim, out_dim)

    prepared, n_out = prepare_params(*raw_params)
    assert n_out == out_dim

    out = jax.block_until_ready(
        projection_mlp_forward(x, prepared, out_dim=out_dim))
    ref = reference_forward(x, raw_params)

    assert out.shape == (B, out_dim)
    assert out.dtype == jnp.float32
    max_diff = float(jnp.max(jnp.abs(out - ref)))
    assert jnp.allclose(out, ref, atol=5e-3, rtol=5e-3), (
        f"mismatch vs reference: max|diff|={max_diff}")

    print("KERNEL_OK")
</pallas_src>

<mosaic_0001>
module attributes {stable_mosaic.version = 11 : i64} {
  func.func @_fused_kernel(%arg0: i32, %arg1: memref<64x128xbf16, #tpu.memory_space<vmem>>, %arg2: memref<128x256xbf16, #tpu.memory_space<vmem>>, %arg3: memref<1x256xf32, #tpu.memory_space<vmem>>, %arg4: memref<1x256xf32, #tpu.memory_space<vmem>>, %arg5: memref<256x128xbf16, #tpu.memory_space<vmem>>, %arg6: memref<64x128xf32, #tpu.memory_space<vmem>>, %arg7: memref<64x256xbf16, #tpu.memory_space<vmem>>) attributes {dimension_semantics = [#tpu.dimension_semantics<arbitrary>], iteration_bounds = array<i64: 1>, scalar_prefetch = 0 : i64, scratch_operands = 1 : i64, tpu.core_type = #tpu.core_type<tc>, window_params = [{pipeline_mode = #tpu.pipeline_mode<synchronous>, transform_indices = @transform_0, window_bounds = array<i64: 64, 128>}, {pipeline_mode = #tpu.pipeline_mode<synchronous>, transform_indices = @transform_1, window_bounds = array<i64: 128, 256>}, {pipeline_mode = #tpu.pipeline_mode<synchronous>, transform_indices = @transform_2, window_bounds = array<i64: 1, 256>}, {pipeline_mode = #tpu.pipeline_mode<synchronous>, transform_indices = @transform_3, window_bounds = array<i64: 1, 256>}, {transform_indices = @transform_4, window_bounds = array<i64: 256, 128>}, {transform_indices = @transform_5, window_bounds = array<i64: 64, 128>}]} {
    %c0_i32 = arith.constant 0 : i32
    %0 = arith.cmpi eq, %arg0, %c0_i32 : i32
    %1 = arith.extui %0 : i1 to i32
    %c0_i32_0 = arith.constant 0 : i32
    %2 = arith.cmpi ne, %1, %c0_i32_0 : i32
    scf.if %2 {
      %c0_11 = arith.constant 0 : index
      %c0_12 = arith.constant 0 : index
      %23 = vector.load %arg1[%c0_11, %c0_12] : memref<64x128xbf16, #tpu.memory_space<vmem>>, vector<64x128xbf16>
      %c0_13 = arith.constant 0 : index
      %c0_14 = arith.constant 0 : index
      %24 = vector.load %arg2[%c0_13, %c0_14] : memref<128x256xbf16, #tpu.memory_space<vmem>>, vector<128x256xbf16>
      %cst_15 = arith.constant dense<0.000000e+00> : vector<64x256xf32>
      %25 = tpu.matmul %23, %24, %cst_15 {dimension_numbers = #tpu.dot_dimension_numbers<[1], [0], [0], [1], [0, 0, 1, 1], [], []>} : vector<64x128xbf16>, vector<128x256xbf16>, vector<64x256xf32> -> vector<64x256xf32>
      %cst_16 = arith.constant dense<0.000000e+00> : vector<256xf32>
      %26 = vector.multi_reduction <add>, %25, %cst_16 [0] : vector<64x256xf32> to vector<256xf32>
      %27 = vector.shape_cast %26 : vector<256xf32> to vector<1x256xf32>
      %cst_17 = arith.constant 6.400000e+01 : f32
      %28 = vector.broadcast %cst_17 : f32 to vector<1x256xf32>
      %29 = arith.divf %27, %28 : vector<1x256xf32>
      %30 = vector.broadcast %29 : vector<1x256xf32> to vector<64x256xf32>
      %31 = arith.subf %25, %30 : vector<64x256xf32>
      %32 = arith.mulf %31, %31 : vector<64x256xf32>
      %cst_18 = arith.constant dense<0.000000e+00> : vector<256xf32>
      %33 = vector.multi_reduction <add>, %32, %cst_18 [0] : vector<64x256xf32> to vector<256xf32>
      %34 = vector.shape_cast %33 : vector<256xf32> to vector<1x256xf32>
      %cst_19 = arith.constant 6.400000e+01 : f32
      %35 = vector.broadcast %cst_19 : f32 to vector<1x256xf32>
      %36 = arith.divf %34, %35 : vector<1x256xf32>
      %c0_20 = arith.constant 0 : index
      %c0_21 = arith.constant 0 : index
      %37 = vector.load %arg3[%c0_20, %c0_21] : memref<1x256xf32, #tpu.memory_space<vmem>>, vector<1x256xf32>
      %cst_22 = arith.constant 9.99999974E-6 : f32
      %38 = vector.broadcast %cst_22 : f32 to vector<1x256xf32>
      %39 = arith.addf %36, %38 : vector<1x256xf32>
      %40 = math.rsqrt %39 : vector<1x256xf32>
      %41 = arith.mulf %37, %40 : vector<1x256xf32>
      %c0_23 = arith.constant 0 : index
      %c0_24 = arith.constant 0 : index
      %42 = vector.load %arg4[%c0_23, %c0_24] : memref<1x256xf32, #tpu.memory_space<vmem>>, vector<1x256xf32>
      %43 = arith.mulf %29, %41 : vector<1x256xf32>
      %44 = arith.subf %42, %43 : vector<1x256xf32>
      %45 = vector.broadcast %41 : vector<1x256xf32> to vector<64x256xf32>
      %46 = arith.mulf %25, %45 : vector<64x256xf32>
      %47 = vector.broadcast %44 : vector<1x256xf32> to vector<64x256xf32>
      %48 = arith.addf %46, %47 : vector<64x256xf32>
      %cst_25 = arith.constant 0.000000e+00 : f32
      %49 = vector.broadcast %cst_25 : f32 to vector<64x256xf32>
      %50 = arith.maximumf %48, %49 : vector<64x256xf32>
      %51 = arith.truncf %50 : vector<64x256xf32> to vector<64x256xbf16>
      %c0_26 = arith.constant 0 : index
      %c0_27 = arith.constant 0 : index
      %52 = vector.load %arg7[%c0_26, %c0_27] : memref<64x256xbf16, #tpu.memory_space<vmem>>, vector<64x256xbf16>
      tpu.vector_store %arg7[%c0_26, %c0_27], %51 {strides = array<i32>} : memref<64x256xbf16, #tpu.memory_space<vmem>>, vector<64x256xbf16>,
    } else {
    }
    %c0 = arith.constant 0 : index
    %c0_1 = arith.constant 0 : index
    %3 = vector.load %arg7[%c0, %c0_1] : memref<64x256xbf16, #tpu.memory_space<vmem>>, vector<64x256xbf16>
    %c0_2 = arith.constant 0 : index
    %c0_3 = arith.constant 0 : index
    %4 = vector.load %arg5[%c0_2, %c0_3] : memref<256x128xbf16, #tpu.memory_space<vmem>>, vector<256x128xbf16>
    %cst = arith.constant dense<0.000000e+00> : vector<64x128xf32>
    %5 = tpu.matmul %3, %4, %cst {dimension_numbers = #tpu.dot_dimension_numbers<[1], [0], [0], [1], [0, 0, 1, 1], [], []>} : vector<64x256xbf16>, vector<256x128xbf16>, vector<64x128xf32> -> vector<64x128xf32>
    %cst_4 = arith.constant dense<0.000000e+00> : vector<128xf32>
    %6 = vector.multi_reduction <add>, %5, %cst_4 [0] : vector<64x128xf32> to vector<128xf32>
    %7 = vector.shape_cast %6 : vector<128xf32> to vector<1x128xf32>
    %cst_5 = arith.constant 6.400000e+01 : f32
    %8 = vector.broadcast %cst_5 : f32 to vector<1x128xf32>
    %9 = arith.divf %7, %8 : vector<1x128xf32>
    %10 = vector.broadcast %9 : vector<1x128xf32> to vector<64x128xf32>
    %11 = arith.subf %5, %10 : vector<64x128xf32>
    %12 = arith.mulf %11, %11 : vector<64x128xf32>
    %cst_6 = arith.constant dense<0.000000e+00> : vector<128xf32>
    %13 = vector.multi_reduction <add>, %12, %cst_6 [0] : vector<64x128xf32> to vector<128xf32>
    %14 = vector.shape_cast %13 : vector<128xf32> to vector<1x128xf32>
    %cst_7 = arith.constant 6.400000e+01 : f32
    %15 = vector.broadcast %cst_7 : f32 to vector<1x128xf32>
    %16 = arith.divf %14, %15 : vector<1x128xf32>
    %cst_8 = arith.constant 9.99999974E-6 : f32
    %17 = vector.broadcast %cst_8 : f32 to vector<1x128xf32>
    %18 = arith.addf %16, %17 : vector<1x128xf32>
    %19 = math.rsqrt %18 : vector<1x128xf32>
    %20 = vector.broadcast %19 : vector<1x128xf32> to vector<64x128xf32>
    %21 = arith.mulf %11, %20 : vector<64x128xf32>
    %c0_9 = arith.constant 0 : index
    %c0_10 = arith.constant 0 : index
    %22 = vector.load %arg6[%c0_9, %c0_10] : memref<64x128xf32, #tpu.memory_space<vmem>>, vector<64x128xf32>
    tpu.vector_store %arg6[%c0_9, %c0_10], %21 {strides = array<i32>} : memref<64x128xf32, #tpu.memory_space<vmem>>, vector<64x128xf32>,
    return
  }
  func.func @transform_0(%arg0: i32) -> (i32, i32) {
    %c0_i32 = arith.constant 0 : i32
    %c0_i32_0 = arith.constant 0 : i32
    %c0_i32_1 = arith.constant 0 : i32
    return %c0_i32, %c0_i32_0 : i32, i32
  }
  func.func @transform_1(%arg0: i32) -> (i32, i32) {
    %c0_i32 = arith.constant 0 : i32
    %c0_i32_0 = arith.constant 0 : i32
    %c0_i32_1 = arith.constant 0 : i32
    return %c0_i32, %c0_i32_0 : i32, i32
  }
  func.func @transform_2(%arg0: i32) -> (i32, i32) {
    %c0_i32 = arith.constant 0 : i32
    %c0_i32_0 = arith.constant 0 : i32
    %c0_i32_1 = arith.constant 0 : i32
    return %c0_i32, %c0_i32_0 : i32, i32
  }
  func.func @transform_3(%arg0: i32) -> (i32, i32) {
    %c0_i32 = arith.constant 0 : i32
    %c0_i32_0 = arith.constant 0 : i32
    %c0_i32_1 = arith.constant 0 : i32
    return %c0_i32, %c0_i32_0 : i32, i32
  }
  func.func @transform_4(%arg0: i32) -> (i32, i32) {
    %c0_i32 = arith.constant 0 : i32
    %c0_i32_0 = arith.constant 0 : i32
    return %c0_i32, %arg0 : i32, i32
  }
  func.func @transform_5(%arg0: i32) -> (i32, i32) {
    %c0_i32 = arith.constant 0 : i32
    %c0_i32_0 = arith.constant 0 : i32
    return %c0_i32, %arg0 : i32, i32
  }
}

</mosaic_0001>

<llo_original>
// kernel: projection_mlp_forward.1
$region0: #{projection_mlp_forward.1}
  #allocation0 [shape = 'u32[]', space=smem, size = 0x4, offset = 0x4, fixed_abs, tag = 'smem constant byte address 0x4 - core index']
  #allocation1 [shape = 'u32[144,128]{1,0:T(1,128)}', space=vmem, size = 0x12000, scoped, tag = 'internal scratch']
  #allocation2 [shape = 'bf16[64,256]{1,0:T(8,128)(2,1)}', space=vmem, size = 0x8000, scoped, tag = 'scratch operand']
  %s0 = inlined_call_operand.vmem [shape: bf16[64,128], index: 0, kind: input, shape index: {}]
  %s1 = inlined_call_operand.hbm [shape: bf16[128,256], index: 1, kind: input, shape index: {}]
  %s2 = inlined_call_operand.vmem [shape: f32[1,256], index: 2, kind: input, shape index: {}]
  %s3 = inlined_call_operand.vmem [shape: f32[1,256], index: 3, kind: input, shape index: {}]
  %s4 = inlined_call_operand.hbm [shape: bf16[256,128], index: 4, kind: input, shape index: {}]
  %s5 = inlined_call_operand.hbm [shape: f32[64,128], index: 5, kind: output, shape index: {}]
  %s6 = sld [smem:[#allocation0]]
  $region42: #{projection_mlp_forward.1} parent=0
    _
  %s8 = ssub.s32 1, %s6
  %s9 = scalar_select 0, %s8, %s6
  $region1: #{projection_mlp_forward.1} parent=0
    #allocation3 [shape = 'u8[65536]{0}', space=vmem, size = 0x10000, scoped, tag = 'input window, operand 1, single buffered']
    #allocation4 [shape = 's32[1]{0}', space=sflag, size = 0x4, scoped, tag = 'scoped memory for projection_mlp_forward.1']
    #allocation5 [shape = 's32[1]{0}', space=sflag, size = 0x4, scoped, tag = 'scoped memory for projection_mlp_forward.1']
    #allocation6 [shape = 'u8[65536]{0}', space=vmem, size = 0x10000, scoped, tag = 'input window, operand 4, single buffered']
    #allocation7 [shape = 's32[1]{0}', space=sflag, size = 0x4, scoped, tag = 'scoped memory for projection_mlp_forward.1']
    #allocation8 [shape = 'u8[32768]{0}', space=vmem, size = 0x8000, scoped, tag = 'output window, operand 0, single buffered']
    %10 = vsyncpa [#allocation4], 0
    %11 = vsyncpa [#allocation7], 0
    %12 = vsyncpa [#allocation5], 0
    // Predicated region
    $region2: #{projection_mlp_forward.1} parent=1 // pred_check
      _
    $region3: #{projection_mlp_forward.1} parent=1 // pred_check_branch
      %14 = sbr.rel (0) target = $region5
    $region4: #{projection_mlp_forward.1} parent=1 // pred_region
      _
    $region5: #{projection_mlp_forward.1} parent=1 // pred_fallthru
      _
    // Predicated region
    $region6: #{projection_mlp_forward.1} parent=1 // pred_check
      _
    $region7: #{projection_mlp_forward.1} parent=1 // pred_check_branch
      %16 = sbr.rel (0) target = $region9
    $region8: #{projection_mlp_forward.1} parent=1 // pred_region
      %s18 = ssub.s32 2048, 2048
      %19 = vsyncadd [#allocation4], %s18
      %s20 = sshll.u32 [#allocation3], 4
      %s21 = int_to_ptr.vmem [resolvable:$true] %s20
      %26 = dma.hbm_to_vmem [thread:$0]  %s1, 2048, %s21, [#allocation4], 128, 128, 8
    $region9: #{projection_mlp_forward.1} parent=1 // pred_fallthru
      _
    // Predicated region
    $region10: #{projection_mlp_forward.1} parent=1 // pred_check
      _
    $region11: #{projection_mlp_forward.1} parent=1 // pred_check_branch
      %28 = sbr.rel (0) target = $region13
    $region12: #{projection_mlp_forward.1} parent=1 // pred_region
      _
    $region13: #{projection_mlp_forward.1} parent=1 // pred_fallthru
      _
    // Predicated region
    $region14: #{projection_mlp_forward.1} parent=1 // pred_check
      _
    $region15: #{projection_mlp_forward.1} parent=1 // pred_check_branch
      %30 = sbr.rel (0) target = $region17
    $region16: #{projection_mlp_forward.1} parent=1 // pred_region
      _
    $region17: #{projection_mlp_forward.1} parent=1 // pred_fallthru
      _
    // Predicated region
    $region18: #{projection_mlp_forward.1} parent=1 // pred_check
      _
    $region19: #{projection_mlp_forward.1} parent=1 // pred_check_branch
      %32 = sbr.rel (0) target = $region21
    $region20: #{projection_mlp_forward.1} parent=1 // pred_region
      %s34 = ssub.s32 2048, 2048
      %35 = vsyncadd [#allocation7], %s34
      %s36 = sshll.u32 [#allocation6], 4
      %s37 = int_to_ptr.vmem [resolvable:$true] %s36
      %42 = dma.hbm_to_vmem [thread:$0]  %s4, 2048, %s37, [#allocation7], 64, 64, 4
    $region21: #{projection_mlp_forward.1} parent=1 // pred_fallthru
      _
    // Predicated region
    $region22: #{projection_mlp_forward.1} parent=1 // pred_check
      _
    $region23: #{projection_mlp_forward.1} parent=1 // pred_check_branch
      %44 = sbr.rel (0) target = $region25
    $region24: #{projection_mlp_forward.1} parent=1 // pred_region
      %45 = dma.done [#allocation4], 2048
    $region25: #{projection_mlp_forward.1} parent=1 // pred_fallthru
      _
    // Predicated region
    $region26: #{projection_mlp_forward.1} parent=1 // pred_check
      _
    $region27: #{projection_mlp_forward.1} parent=1 // pred_check_branch
      %47 = sbr.rel (0) target = $region29
    $region28: #{projection_mlp_forward.1} parent=1 // pred_region
      %48 = dma.done [#allocation7], 2048
    $region29: #{projection_mlp_forward.1} parent=1 // pred_fallthru
      _
    %p50 = scmp.eq.s32.totalorder 0, 0
    // Predicated region
    $region30: #{projection_mlp_forward.1} parent=1 // pred_check
      %p51 = pneg %p50
    $region31: #{projection_mlp_forward.1} parent=1 // pred_check_branch
      %53 = sbr.rel (%p51) target = $region33
    $region32: #{projection_mlp_forward.1} parent=1 // pred_region
      %v54 = vld [vmem:[%s0] sm:$0xf]
      %v55 = vld [vmem:[%s0 + $0x4] sm:$0xf]
      %v56 = vld [vmem:[%s0 + $0x8] sm:$0xf]
      %v57 = vld [vmem:[%s0 + $0xc] sm:$0xf]
      %v58 = vld [vmem:[%s0 + $0x10] sm:$0xf]
      %v59 = vld [vmem:[%s0 + $0x14] sm:$0xf]
      %v60 = vld [vmem:[%s0 + $0x18] sm:$0xf]
      %v61 = vld [vmem:[%s0 + $0x1c] sm:$0xf]
      %v62 = vld [vmem:[#allocation3] sm:$0xff]
      %v63 = vld [vmem:[#allocation3 + $0x8] sm:$0xff]
      %v64 = vld [vmem:[#allocation3 + $0x10] sm:$0xff]
      %v65 = vld [vmem:[#allocation3 + $0x18] sm:$0xff]
      %v66 = vld [vmem:[#allocation3 + $0x20] sm:$0xff]
      %v67 = vld [vmem:[#allocation3 + $0x28] sm:$0xff]
      %v68 = vld [vmem:[#allocation3 + $0x30] sm:$0xff]
      %v69 = vld [vmem:[#allocation3 + $0x38] sm:$0xff]
      %v70 = vld [vmem:[#allocation3 + $0x40] sm:$0xff]
      %v71 = vld [vmem:[#allocation3 + $0x48] sm:$0xff]
      %v72 = vld [vmem:[#allocation3 + $0x50] sm:$0xff]
      %v73 = vld [vmem:[#allocation3 + $0x58] sm:$0xff]
      %v74 = vld [vmem:[#allocation3 + $0x60] sm:$0xff]
      %v75 = vld [vmem:[#allocation3 + $0x68] sm:$0xff]
      %v76 = vld [vmem:[#allocation3 + $0x70] sm:$0xff]
      %v77 = vld [vmem:[#allocation3 + $0x78] sm:$0xff]
      %v86 = vunpack.c.l.b16 %v54
      %v87 = vunpack.c.l.b16 %v55
      %v88 = vunpack.c.l.b16 %v56
      %v89 = vunpack.c.l.b16 %v57
      %v90 = vunpack.c.l.b16 %v58
      %v91 = vunpack.c.l.b16 %v59
      %v92 = vunpack.c.l.b16 %v60
      %v93 = vunpack.c.l.b16 %v61
      %v94 = vpack.c.b16 %v87, %v86
      %v95 = vpack.c.b16 %v89, %v88
      %v96 = vpack.c.b16 %v91, %v90
      %v97 = vpack.c.b16 %v93, %v92
      %v118 = vunpack.c.l.b16 %v62
      %v119 = vunpack.c.h.b16 %v62
      %v120 = vunpack.c.l.b16 %v63
      %v121 = vunpack.c.h.b16 %v63
      %v122 = vunpack.c.l.b16 %v64
      %v123 = vunpack.c.h.b16 %v64
      %v124 = vunpack.c.l.b16 %v65
      %v125 = vunpack.c.h.b16 %v65
      %v126 = vunpack.c.l.b16 %v66
      %v127 = vunpack.c.h.b16 %v66
      %v128 = vunpack.c.l.b16 %v67
      %v129 = vunpack.c.h.b16 %v67
      %v130 = vunpack.c.l.b16 %v68
      %v131 = vunpack.c.h.b16 %v68
      %v132 = vunpack.c.l.b16 %v69
      %v133 = vunpack.c.h.b16 %v69
      %v134 = vunpack.c.l.b16 %v70
      %v135 = vunpack.c.h.b16 %v70
      %v136 = vunpack.c.l.b16 %v71
      %v137 = vunpack.c.h.b16 %v71
      %v138 = vunpack.c.l.b16 %v72
      %v139 = vunpack.c.h.b16 %v72
      %v140 = vunpack.c.l.b16 %v73
      %v141 = vunpack.c.h.b16 %v73
      %v142 = vunpack.c.l.b16 %v74
      %v143 = vunpack.c.h.b16 %v74
      %v144 = vunpack.c.l.b16 %v75
      %v145 = vunpack.c.h.b16 %v75
      %v146 = vunpack.c.l.b16 %v76
      %v147 = vunpack.c.h.b16 %v76
      %v148 = vunpack.c.l.b16 %v77
      %v149 = vunpack.c.h.b16 %v77
      %v150 = vpack.c.b16 %v120, %v118
      %v151 = vpack.c.b16 %v121, %v119
      %v152 = vpack.c.b16 %v124, %v122
      %v153 = vpack.c.b16 %v125, %v123
      %v154 = vpack.c.b16 %v128, %v126
      %v155 = vpack.c.b16 %v129, %v127
      %v156 = vpack.c.b16 %v132, %v130
      %v157 = vpack.c.b16 %v133, %v131
      %v158 = vpack.c.b16 %v136, %v134
      %v159 = vpack.c.b16 %v137, %v135
      %v160 = vpack.c.b16 %v140, %v138
      %v161 = vpack.c.b16 %v141, %v139
      %v162 = vpack.c.b16 %v144, %v142
      %v163 = vpack.c.b16 %v145, %v143
      %v164 = vpack.c.b16 %v148, %v146
      %v165 = vpack.c.b16 %v149, %v147
      %182 = vmatprep.subr.bf16.mxu0 %v165
      %183 = vmatpush1.bf16.msra.mxu0 %v164
      %184 = vmatprep.subr.bf16.mxu0 %v163
      %185 = vmatpush1.bf16.msra.mxu0 %v162
      %186 = vmatprep.subr.bf16.mxu0 %v161
      %187 = vmatpush1.bf16.msra.mxu0 %v160
      %188 = vmatprep.subr.bf16.mxu0 %v159
      %189 = vmatpush1.bf16.msra.mxu0 %v158
      %190 = vmatprep.subr.bf16.mxu0 %v157
      %191 = vmatpush1.bf16.msra.mxu0 %v156
      %192 = vmatprep.subr.bf16.mxu0 %v155
      %193 = vmatpush1.bf16.msra.mxu0 %v154
      %194 = vmatprep.subr.bf16.mxu0 %v153
      %195 = vmatpush1.bf16.msra.mxu0 %v152
      %196 = vmatprep.subr.bf16.mxu0 %v151
      %197 = vmatpush1.bf16.msra.mxu0 %v150
      %198 = vmatprep.subr.bf16.mxu0 0
      %199 = vmatpush2.bf16.msra.mxu0 0
      %200 = vmatprep.subr.bf16.mxu0 0
      %201 = vmatpush2.bf16.msra.mxu0 0
      %202 = vmatprep.subr.bf16.mxu0 0
      %203 = vmatpush2.bf16.msra.mxu0 0
      %204 = vmatprep.subr.bf16.mxu0 0
      %205 = vmatpush2.bf16.msra.mxu0 0
      %206 = vmatprep.subr.bf16.mxu0 0
      %207 = vmatpush2.bf16.msra.mxu0 0
      %208 = vmatprep.subr.bf16.mxu0 0
      %209 = vmatpush2.bf16.msra.mxu0 0
      %210 = vmatprep.subr.bf16.mxu0 0
      %211 = vmatpush2.bf16.msra.mxu0 0
      %212 = vmatprep.subr.bf16.mxu0 0
      %213 = vmatpush2.bf16.msra.mxu0 0
      %214 = vmatprep.mubr.bf16.mxu0 0
      %215 = vmatmul.mubr.bf16.gmra.mxu0 %v94
      %v216 = vpop.f32.mrf.mxu0
      %v217 = vadd.f32 0.0, %v216
      %v218 = vpop.f32.mrf.mxu0
      %v219 = vadd.f32 0.0, %v218
      %v220 = vpop.f32.mrf.mxu0
      %v221 = vadd.f32 0.0, %v220
      %v222 = vpop.f32.mrf.mxu0
      %v223 = vadd.f32 0.0, %v222
      %224 = vmatprep.mubr.bf16.mxu0 0
      %225 = vmatmul.mubr.bf16.gmra.mxu0 %v95
      %v226 = vpop.f32.mrf.mxu0
      %v227 = vadd.f32 0.0, %v226
      %v228 = vpop.f32.mrf.mxu0
      %v229 = vadd.f32 0.0, %v228
      %v230 = vpop.f32.mrf.mxu0
      %v231 = vadd.f32 0.0, %v230
      %v232 = vpop.f32.mrf.mxu0
      %v233 = vadd.f32 0.0, %v232
      %234 = vmatprep.mubr.bf16.mxu0 0
      %235 = vmatmul.mubr.bf16.gmra.mxu0 %v96
      %v236 = vpop.f32.mrf.mxu0
      %v237 = vadd.f32 0.0, %v236
      %v238 = vpop.f32.mrf.mxu0
      %v239 = vadd.f32 0.0, %v238
      %v240 = vpop.f32.mrf.mxu0
      %v241 = vadd.f32 0.0, %v240
      %v242 = vpop.f32.mrf.mxu0
      %v243 = vadd.f32 0.0, %v242
      %244 = vmatprep.mubr.bf16.mxu0 0
      %245 = vmatmul.mubr.bf16.gmra.mxu0 %v97
      %v246 = vpop.f32.mrf.mxu0
      %v247 = vadd.f32 0.0, %v246
      %v248 = vpop.f32.mrf.mxu0
      %v249 = vadd.f32 0.0, %v248
      %v250 = vpop.f32.mrf.mxu0
      %v251 = vadd.f32 0.0, %v250
      %v252 = vpop.f32.mrf.mxu0
      %v253 = vadd.f32 0.0, %v252
      %254 = vdwg.mxu0
      %v255 = vadd.f32 %v217, %v221
      %v256 = vadd.f32 %v255, %v227
      %v257 = vadd.f32 %v256, %v231
      %v258 = vadd.f32 %v257, %v237
      %v259 = vadd.f32 %v258, %v241
      %v260 = vadd.f32 %v259, %v247
      %v261 = vadd.f32 %v260, %v251
      %v262 = vrot.slane %v261, 4
      %v263 = vadd.f32 %v261, %v262
      %v264 = vrot.slane %v263, 2
      %v265 = vadd.f32 %v263, %v264
      %v266 = vrot.slane %v265, 1
      %v267 = vadd.f32 %v265, %v266
      %v268 = vadd.f32 %v219, %v223
      %v269 = vadd.f32 %v268, %v229
      %v270 = vadd.f32 %v269, %v233
      %v271 = vadd.f32 %v270, %v239
      %v272 = vadd.f32 %v271, %v243
      %v273 = vadd.f32 %v272, %v249
      %v274 = vadd.f32 %v273, %v253
      %v275 = vrot.slane %v274, 4
      %v276 = vadd.f32 %v274, %v275
      %v277 = vrot.slane %v276, 2
      %v278 = vadd.f32 %v276, %v277
      %v279 = vrot.slane %v278, 1
      %v280 = vadd.f32 %v278, %v279
      %v281 = vrcp.pop 64.0
      %v282 = vmul.f32 %v267, %v281
      %v283 = vmul.f32 %v280, %v281
      %v284 = vsub.f32 %v217, %v282
      %v285 = vsub.f32 %v219, %v283
      %v286 = vsub.f32 %v221, %v282
      %v287 = vsub.f32 %v223, %v283
      %v288 = vsub.f32 %v227, %v282
      %v289 = vsub.f32 %v229, %v283
      %v290 = vsub.f32 %v231, %v282
      %v291 = vsub.f32 %v233, %v283
      %v292 = vsub.f32 %v237, %v282
      %v293 = vsub.f32 %v239, %v283
      %v294 = vsub.f32 %v241, %v282
      %v295 = vsub.f32 %v243, %v283
      %v296 = vsub.f32 %v247, %v282
      %v297 = vsub.f32 %v249, %v283
      %v298 = vsub.f32 %v251, %v282
      %v299 = vsub.f32 %v253, %v283
      %v300 = vmul.f32 %v284, %v284
      %v301 = vmul.f32 %v285, %v285
      %v302 = vmul.f32 %v286, %v286
      %v303 = vmul.f32 %v287, %v287
      %v304 = vmul.f32 %v288, %v288
      %v305 = vmul.f32 %v289, %v289
      %v306 = vmul.f32 %v290, %v290
      %v307 = vmul.f32 %v291, %v291
      %v308 = vmul.f32 %v292, %v292
      %v309 = vmul.f32 %v293, %v293
      %v310 = vmul.f32 %v294, %v294
      %v311 = vmul.f32 %v295, %v295
      %v312 = vmul.f32 %v296, %v296
      %v313 = vmul.f32 %v297, %v297
      %v314 = vmul.f32 %v298, %v298
      %v315 = vmul.f32 %v299, %v299
      %v316 = vadd.f32 %v300, %v302
      %v317 = vadd.f32 %v316, %v304
      %v318 = vadd.f32 %v317, %v306
      %v319 = vadd.f32 %v318, %v308
      %v320 = vadd.f32 %v319, %v310
      %v321 = vadd.f32 %v320, %v312
      %v322 = vadd.f32 %v321, %v314
      %v323 = vrot.slane %v322, 4
      %v324 = vadd.f32 %v322, %v323
      %v325 = vrot.slane %v324, 2
      %v326 = vadd.f32 %v324, %v325
      %v327 = vrot.slane %v326, 1
      %v328 = vadd.f32 %v326, %v327
      %v329 = vadd.f32 %v301, %v303
      %v330 = vadd.f32 %v329, %v305
      %v331 = vadd.f32 %v330, %v307
      %v332 = vadd.f32 %v331, %v309
      %v333 = vadd.f32 %v332, %v311
      %v334 = vadd.f32 %v333, %v313
      %v335 = vadd.f32 %v334, %v315
      %v336 = vrot.slane %v335, 4
      %v337 = vadd.f32 %v335, %v336
      %v338 = vrot.slane %v337, 2
      %v339 = vadd.f32 %v337, %v338
      %v340 = vrot.slane %v339, 1
      %v341 = vadd.f32 %v339, %v340
      %v342 = vmul.f32 %v328, %v281
      %v343 = vmul.f32 %v341, %v281
      %v344 = vld [vmem:[%s2] sm:$0x3]
      %v345 = vadd.f32 %v342, 1e-05
      %v346 = vadd.f32 %v343, 1e-05
      %v347 = vrsqrt.pop %v345
      %v348 = vrsqrt.pop %v346
      %v351 = vcombine.low %v347, %v348
      %v353 = vunpack.c.l.s4 1966171168
      %v354 = vunpack.c.0.s8 %v353
      %v355 = vlaneseq
      %v356 = vshrl.u32 %v355, 7
      %v357 = vsub.s32 %v354, %v356
      %v358 = vrot.slane %v351, %v357
      %v360 = vunpack.c.l.s4 1966171168
      %v361 = vunpack.c.0.s8 %v360
      %v362 = vlaneseq
      %v363 = vshrl.u32 %v362, 7
      %v364 = vsub.s32 %v361, %v363
      %v365 = vrot.slane %v358, %v364
      %v367 = vmul.f32 %v344, %v365
      %v368 = vld [vmem:[%s3] sm:$0x3]
      %v370 = vlaneseq
      %v371 = vshrl.u32 %v370, 7
      %v372 = vsub.s32 0, %v371
      %v373 = vrot.slane %v367, %v372
      %v374 = vlaneseq
      %v375 = vshrl.u32 %v374, 7
      %v376 = vsub.s32 1, %v375
      %v377 = vrot.slane %v367, %v376
      %v380 = vmul.f32 %v282, %v373
      %v381 = vmul.f32 %v283, %v377
      %v384 = vcombine.low %v380, %v381
      %v386 = vunpack.c.l.s4 1966171168
      %v387 = vunpack.c.0.s8 %v386
      %v388 = vlaneseq
      %v389 = vshrl.u32 %v388, 7
      %v390 = vsub.s32 %v387, %v389
      %v391 = vrot.slane %v384, %v390
      %v393 = vunpack.c.l.s4 1966171168
      %v394 = vunpack.c.0.s8 %v393
      %v395 = vlaneseq
      %v396 = vshrl.u32 %v395, 7
      %v397 = vsub.s32 %v394, %v396
      %v398 = vrot.slane %v391, %v397
      %v400 = vsub.f32 %v368, %v398
      %v401 = vmul.f32 %v217, %v373
      %v402 = vmul.f32 %v219, %v377
      %v403 = vmul.f32 %v221, %v373
      %v404 = vmul.f32 %v223, %v377
      %v405 = vmul.f32 %v227, %v373
      %v406 = vmul.f32 %v229, %v377
      %v407 = vmul.f32 %v231, %v373
      %v408 = vmul.f32 %v233, %v377
      %v409 = vmul.f32 %v237, %v373
      %v410 = vmul.f32 %v239, %v377
      %v411 = vmul.f32 %v241, %v373
      %v412 = vmul.f32 %v243, %v377
      %v413 = vmul.f32 %v247, %v373
      %v414 = vmul.f32 %v249, %v377
      %v415 = vmul.f32 %v251, %v373
      %v416 = vmul.f32 %v253, %v377
      %v418 = vlaneseq
      %v419 = vshrl.u32 %v418, 7
      %v420 = vsub.s32 0, %v419
      %v421 = vrot.slane %v400, %v420
      %v422 = vlaneseq
      %v423 = vshrl.u32 %v422, 7
      %v424 = vsub.s32 1, %v423
      %v425 = vrot.slane %v400, %v424
      %v428 = vadd.f32 %v401, %v421
      %v429 = vadd.f32 %v402, %v425
      %v430 = vadd.f32 %v403, %v421
      %v431 = vadd.f32 %v404, %v425
      %v432 = vadd.f32 %v405, %v421
      %v433 = vadd.f32 %v406, %v425
      %v434 = vadd.f32 %v407, %v421
      %v435 = vadd.f32 %v408, %v425
      %v436 = vadd.f32 %v409, %v421
      %v437 = vadd.f32 %v410, %v425
      %v438 = vadd.f32 %v411, %v421
      %v439 = vadd.f32 %v412, %v425
      %v440 = vadd.f32 %v413, %v421
      %v441 = vadd.f32 %v414, %v425
      %v442 = vadd.f32 %v415, %v421
      %v443 = vadd.f32 %v416, %v425
      %v444 = vmax.f32 %v428, 0.0
      %v445 = vmax.f32 %v429, 0.0
      %v446 = vmax.f32 %v430, 0.0
      %v447 = vmax.f32 %v431, 0.0
      %v448 = vmax.f32 %v432, 0.0
      %v449 = vmax.f32 %v433, 0.0
      %v450 = vmax.f32 %v434, 0.0
      %v451 = vmax.f32 %v435, 0.0
      %v452 = vmax.f32 %v436, 0.0
      %v453 = vmax.f32 %v437, 0.0
      %v454 = vmax.f32 %v438, 0.0
      %v455 = vmax.f32 %v439, 0.0
      %v456 = vmax.f32 %v440, 0.0
      %v457 = vmax.f32 %v441, 0.0
      %v458 = vmax.f32 %v442, 0.0
      %v459 = vmax.f32 %v443, 0.0
      %v460 = vpack.c.bf16 %v446, %v444
      %v461 = vpack.c.bf16 %v447, %v445
      %v462 = vpack.c.bf16 %v450, %v448
      %v463 = vpack.c.bf16 %v451, %v449
      %v464 = vpack.c.bf16 %v454, %v452
      %v465 = vpack.c.bf16 %v455, %v453
      %v466 = vpack.c.bf16 %v458, %v456
      %v467 = vpack.c.bf16 %v459, %v457
      %v476 = vunpack.c.l.b16 %v460
      %v477 = vunpack.c.l.b16 %v461
      %v478 = vunpack.c.h.b16 %v460
      %v479 = vunpack.c.h.b16 %v461
      %v480 = vunpack.c.l.b16 %v462
      %v481 = vunpack.c.l.b16 %v463
      %v482 = vunpack.c.h.b16 %v462
      %v483 = vunpack.c.h.b16 %v463
      %v484 = vunpack.c.l.b16 %v464
      %v485 = vunpack.c.l.b16 %v465
      %v486 = vunpack.c.h.b16 %v464
      %v487 = vunpack.c.h.b16 %v465
      %v488 = vunpack.c.l.b16 %v466
      %v489 = vunpack.c.l.b16 %v467
      %v490 = vunpack.c.h.b16 %v466
      %v491 = vunpack.c.h.b16 %v467
      %v492 = vpack.c.b16 %v477, %v476
      %v493 = vpack.c.b16 %v479, %v478
      %v494 = vpack.c.b16 %v481, %v480
      %v495 = vpack.c.b16 %v483, %v482
      %v496 = vpack.c.b16 %v485, %v484
      %v497 = vpack.c.b16 %v487, %v486
      %v498 = vpack.c.b16 %v489, %v488
      %v499 = vpack.c.b16 %v491, %v490
      %508 = vst [vmem:[#allocation2] sm:$0xff] %v492
      %509 = vst [vmem:[#allocation2 + $0x8] sm:$0xff] %v493
      %510 = vst [vmem:[#allocation2 + $0x10] sm:$0xff] %v494
      %511 = vst [vmem:[#allocation2 + $0x18] sm:$0xff] %v495
      %512 = vst [vmem:[#allocation2 + $0x20] sm:$0xff] %v496
      %513 = vst [vmem:[#allocation2 + $0x28] sm:$0xff] %v497
      %514 = vst [vmem:[#allocation2 + $0x30] sm:$0xff] %v498
      %515 = vst [vmem:[#allocation2 + $0x38] sm:$0xff] %v499
    $region33: #{projection_mlp_forward.1} parent=1 // pred_fallthru
      _
    %v516 = vld [vmem:[#allocation2] sm:$0xff]
    %v517 = vld [vmem:[#allocation2 + $0x8] sm:$0xff]
    %v518 = vld [vmem:[#allocation2 + $0x10] sm:$0xff]
    %v519 = vld [vmem:[#allocation2 + $0x18] sm:$0xff]
    %v520 = vld [vmem:[#allocation2 + $0x20] sm:$0xff]
    %v521 = vld [vmem:[#allocation2 + $0x28] sm:$0xff]
    %v522 = vld [vmem:[#allocation2 + $0x30] sm:$0xff]
    %v523 = vld [vmem:[#allocation2 + $0x38] sm:$0xff]
    %v524 = vld [vmem:[#allocation6] sm:$0xf]
    %v525 = vld [vmem:[#allocation6 + $0x4] sm:$0xf]
    %v526 = vld [vmem:[#allocation6 + $0x8] sm:$0xf]
    %v527 = vld [vmem:[#allocation6 + $0xc] sm:$0xf]
    %v528 = vld [vmem:[#allocation6 + $0x10] sm:$0xf]
    %v529 = vld [vmem:[#allocation6 + $0x14] sm:$0xf]
    %v530 = vld [vmem:[#allocation6 + $0x18] sm:$0xf]
    %v531 = vld [vmem:[#allocation6 + $0x1c] sm:$0xf]
    %v532 = vld [vmem:[#allocation6 + $0x20] sm:$0xf]
    %v533 = vld [vmem:[#allocation6 + $0x24] sm:$0xf]
    %v534 = vld [vmem:[#allocation6 + $0x28] sm:$0xf]
    %v535 = vld [vmem:[#allocation6 + $0x2c] sm:$0xf]
    %v536 = vld [vmem:[#allocation6 + $0x30] sm:$0xf]
    %v537 = vld [vmem:[#allocation6 + $0x34] sm:$0xf]
    %v538 = vld [vmem:[#allocation6 + $0x38] sm:$0xf]
    %v539 = vld [vmem:[#allocation6 + $0x3c] sm:$0xf]
    %v540 = vld [vmem:[#allocation6 + $0x40] sm:$0xf]
    %v541 = vld [vmem:[#allocation6 + $0x44] sm:$0xf]
    %v542 = vld [vmem:[#allocation6 + $0x48] sm:$0xf]
    %v543 = vld [vmem:[#allocation6 + $0x4c] sm:$0xf]
    %v544 = vld [vmem:[#allocation6 + $0x50] sm:$0xf]
    %v545 = vld [vmem:[#allocation6 + $0x54] sm:$0xf]
    %v546 = vld [vmem:[#allocation6 + $0x58] sm:$0xf]
    %v547 = vld [vmem:[#allocation6 + $0x5c] sm:$0xf]
    %v548 = vld [vmem:[#allocation6 + $0x60] sm:$0xf]
    %v549 = vld [vmem:[#allocation6 + $0x64] sm:$0xf]
    %v550 = vld [vmem:[#allocation6 + $0x68] sm:$0xf]
    %v551 = vld [vmem:[#allocation6 + $0x6c] sm:$0xf]
    %v552 = vld [vmem:[#allocation6 + $0x70] sm:$0xf]
    %v553 = vld [vmem:[#allocation6 + $0x74] sm:$0xf]
    %v554 = vld [vmem:[#allocation6 + $0x78] sm:$0xf]
    %v555 = vld [vmem:[#allocation6 + $0x7c] sm:$0xf]
    %v564 = vunpack.c.l.b16 %v516
    %v565 = vunpack.c.h.b16 %v516
    %v566 = vunpack.c.l.b16 %v517
    %v567 = vunpack.c.h.b16 %v517
    %v568 = vunpack.c.l.b16 %v518
    %v569 = vunpack.c.h.b16 %v518
    %v570 = vunpack.c.l.b16 %v519
    %v571 = vunpack.c.h.b16 %v519
    %v572 = vunpack.c.l.b16 %v520
    %v573 = vunpack.c.h.b16 %v520
    %v574 = vunpack.c.l.b16 %v521
    %v575 = vunpack.c.h.b16 %v521
    %v576 = vunpack.c.l.b16 %v522
    %v577 = vunpack.c.h.b16 %v522
    %v578 = vunpack.c.l.b16 %v523
    %v579 = vunpack.c.h.b16 %v523
    %v580 = vpack.c.b16 %v566, %v564
    %v581 = vpack.c.b16 %v567, %v565
    %v582 = vpack.c.b16 %v570, %v568
    %v583 = vpack.c.b16 %v571, %v569
    %v584 = vpack.c.b16 %v574, %v572
    %v585 = vpack.c.b16 %v575, %v573
    %v586 = vpack.c.b16 %v578, %v576
    %v587 = vpack.c.b16 %v579, %v577
    %v628 = vunpack.c.l.b16 %v524
    %v629 = vunpack.c.l.b16 %v525
    %v630 = vunpack.c.l.b16 %v526
    %v631 = vunpack.c.l.b16 %v527
    %v632 = vunpack.c.l.b16 %v528
    %v633 = vunpack.c.l.b16 %v529
    %v634 = vunpack.c.l.b16 %v530
    %v635 = vunpack.c.l.b16 %v531
    %v636 = vunpack.c.l.b16 %v532
    %v637 = vunpack.c.l.b16 %v533
    %v638 = vunpack.c.l.b16 %v534
    %v639 = vunpack.c.l.b16 %v535
    %v640 = vunpack.c.l.b16 %v536
    %v641 = vunpack.c.l.b16 %v537
    %v642 = vunpack.c.l.b16 %v538
    %v643 = vunpack.c.l.b16 %v539
    %v644 = vunpack.c.l.b16 %v540
    %v645 = vunpack.c.l.b16 %v541
    %v646 = vunpack.c.l.b16 %v542
    %v647 = vunpack.c.l.b16 %v543
    %v648 = vunpack.c.l.b16 %v544
    %v649 = vunpack.c.l.b16 %v545
    %v650 = vunpack.c.l.b16 %v546
    %v651 = vunpack.c.l.b16 %v547
    %v652 = vunpack.c.l.b16 %v548
    %v653 = vunpack.c.l.b16 %v549
    %v654 = vunpack.c.l.b16 %v550
    %v655 = vunpack.c.l.b16 %v551
    %v656 = vunpack.c.l.b16 %v552
    %v657 = vunpack.c.l.b16 %v553
    %v658 = vunpack.c.l.b16 %v554
    %v659 = vunpack.c.l.b16 %v555
    %v660 = vpack.c.b16 %v629, %v628
    %v661 = vpack.c.b16 %v631, %v630
    %v662 = vpack.c.b16 %v633, %v632
    %v663 = vpack.c.b16 %v635, %v634
    %v664 = vpack.c.b16 %v637, %v636
    %v665 = vpack.c.b16 %v639, %v638
    %v666 = vpack.c.b16 %v641, %v640
    %v667 = vpack.c.b16 %v643, %v642
    %v668 = vpack.c.b16 %v645, %v644
    %v669 = vpack.c.b16 %v647, %v646
    %v670 = vpack.c.b16 %v649, %v648
    %v671 = vpack.c.b16 %v651, %v650
    %v672 = vpack.c.b16 %v653, %v652
    %v673 = vpack.c.b16 %v655, %v654
    %v674 = vpack.c.b16 %v657, %v656
    %v675 = vpack.c.b16 %v659, %v658
    %692 = vmatprep.subr.bf16.mxu0 0
    %693 = vmatpush1.bf16.msra.mxu0 %v667
    %694 = vmatprep.subr.bf16.mxu0 0
    %695 = vmatpush1.bf16.msra.mxu0 %v666
    %696 = vmatprep.subr.bf16.mxu0 0
    %697 = vmatpush1.bf16.msra.mxu0 %v665
    %698 = vmatprep.subr.bf16.mxu0 0
    %699 = vmatpush1.bf16.msra.mxu0 %v664
    %700 = vmatprep.subr.bf16.mxu0 0
    %701 = vmatpush1.bf16.msra.mxu0 %v663
    %702 = vmatprep.subr.bf16.mxu0 0
    %703 = vmatpush1.bf16.msra.mxu0 %v662
    %704 = vmatprep.subr.bf16.mxu0 0
    %705 = vmatpush1.bf16.msra.mxu0 %v661
    %706 = vmatprep.subr.bf16.mxu0 0
    %707 = vmatpush1.bf16.msra.mxu0 %v660
    %708 = vmatprep.subr.bf16.mxu0 0
    %709 = vmatpush2.bf16.msra.mxu0 %v675
    %710 = vmatprep.subr.bf16.mxu0 0
    %711 = vmatpush2.bf16.msra.mxu0 %v674
    %712 = vmatprep.subr.bf16.mxu0 0
    %713 = vmatpush2.bf16.msra.mxu0 %v673
    %714 = vmatprep.subr.bf16.mxu0 0
    %715 = vmatpush2.bf16.msra.mxu0 %v672
    %716 = vmatprep.subr.bf16.mxu0 0
    %717 = vmatpush2.bf16.msra.mxu0 %v671
    %718 = vmatprep.subr.bf16.mxu0 0
    %719 = vmatpush2.bf16.msra.mxu0 %v670
    %720 = vmatprep.subr.bf16.mxu0 0
    %721 = vmatpush2.bf16.msra.mxu0 %v669
    %722 = vmatprep.subr.bf16.mxu0 0
    %723 = vmatpush2.bf16.msra.mxu0 %v668
    %724 = vmatprep.mubr.bf16.mxu0 %v581
    %725 = vmatmul.mubr.bf16.gmra.mxu0 %v580
    %v726 = vpop.f32.mrf.mxu0
    %v727 = vadd.f32 0.0, %v726
    %v728 = vpop.f32.mrf.mxu0
    %v729 = vpop.f32.mrf.mxu0
    %v730 = vadd.f32 0.0, %v729
    %v731 = vpop.f32.mrf.mxu0
    %732 = vmatprep.mubr.bf16.mxu0 %v583
    %733 = vmatmul.mubr.bf16.gmra.mxu0 %v582
    %v734 = vpop.f32.mrf.mxu0
    %v735 = vadd.f32 0.0, %v734
    %v736 = vpop.f32.mrf.mxu0
    %v737 = vpop.f32.mrf.mxu0
    %v738 = vadd.f32 0.0, %v737
    %v739 = vpop.f32.mrf.mxu0
    %740 = vmatprep.mubr.bf16.mxu0 %v585
    %741 = vmatmul.mubr.bf16.gmra.mxu0 %v584
    %v742 = vpop.f32.mrf.mxu0
    %v743 = vadd.f32 0.0, %v742
    %v744 = vpop.f32.mrf.mxu0
    %v745 = vpop.f32.mrf.mxu0
    %v746 = vadd.f32 0.0, %v745
    %v747 = vpop.f32.mrf.mxu0
    %748 = vmatprep.mubr.bf16.mxu0 %v587
    %749 = vmatmul.mubr.bf16.gmra.mxu0 %v586
    %v750 = vpop.f32.mrf.mxu0
    %v751 = vadd.f32 0.0, %v750
    %v752 = vpop.f32.mrf.mxu0
    %v753 = vpop.f32.mrf.mxu0
    %v754 = vadd.f32 0.0, %v753
    %v755 = vpop.f32.mrf.mxu0
    %756 = vdwg.mxu0
    %v757 = vadd.f32 %v727, %v730
    %v758 = vadd.f32 %v757, %v735
    %v759 = vadd.f32 %v758, %v738
    %v760 = vadd.f32 %v759, %v743
    %v761 = vadd.f32 %v760, %v746
    %v762 = vadd.f32 %v761, %v751
    %v763 = vadd.f32 %v762, %v754
    %v764 = vrot.slane %v763, 4
    %v765 = vadd.f32 %v763, %v764
    %v766 = vrot.slane %v765, 2
    %v767 = vadd.f32 %v765, %v766
    %v768 = vrot.slane %v767, 1
    %v769 = vadd.f32 %v767, %v768
    %v770 = vrcp.pop 64.0
    %v771 = vmul.f32 %v769, %v770
    %v772 = vsub.f32 %v727, %v771
    %v773 = vsub.f32 %v730, %v771
    %v774 = vsub.f32 %v735, %v771
    %v775 = vsub.f32 %v738, %v771
    %v776 = vsub.f32 %v743, %v771
    %v777 = vsub.f32 %v746, %v771
    %v778 = vsub.f32 %v751, %v771
    %v779 = vsub.f32 %v754, %v771
    %v780 = vmul.f32 %v772, %v772
    %v781 = vmul.f32 %v773, %v773
    %v782 = vmul.f32 %v774, %v774
    %v783 = vmul.f32 %v775, %v775
    %v784 = vmul.f32 %v776, %v776
    %v785 = vmul.f32 %v777, %v777
    %v786 = vmul.f32 %v778, %v778
    %v787 = vmul.f32 %v779, %v779
    %v788 = vadd.f32 %v780, %v781
    %v789 = vadd.f32 %v788, %v782
    %v790 = vadd.f32 %v789, %v783
    %v791 = vadd.f32 %v790, %v784
    %v792 = vadd.f32 %v791, %v785
    %v793 = vadd.f32 %v792, %v786
    %v794 = vadd.f32 %v793, %v787
    %v795 = vrot.slane %v794, 4
    %v796 = vadd.f32 %v794, %v795
    %v797 = vrot.slane %v796, 2
    %v798 = vadd.f32 %v796, %v797
    %v799 = vrot.slane %v798, 1
    %v800 = vadd.f32 %v798, %v799
    %v801 = vmul.f32 %v800, %v770
    %v802 = vadd.f32 %v801, 1e-05
    %v803 = vrsqrt.pop %v802
    %v804 = vmul.f32 %v772, %v803
    %v805 = vmul.f32 %v773, %v803
    %v806 = vmul.f32 %v774, %v803
    %v807 = vmul.f32 %v775, %v803
    %v808 = vmul.f32 %v776, %v803
    %v809 = vmul.f32 %v777, %v803
    %v810 = vmul.f32 %v778, %v803
    %v811 = vmul.f32 %v779, %v803
    %812 = vst [vmem:[#allocation8] sm:$0xff] %v804
    %813 = vst [vmem:[#allocation8 + $0x8] sm:$0xff] %v805
    %814 = vst [vmem:[#allocation8 + $0x10] sm:$0xff] %v806
    %815 = vst [vmem:[#allocation8 + $0x18] sm:$0xff] %v807
    %816 = vst [vmem:[#allocation8 + $0x20] sm:$0xff] %v808
    %817 = vst [vmem:[#allocation8 + $0x28] sm:$0xff] %v809
    %818 = vst [vmem:[#allocation8 + $0x30] sm:$0xff] %v810
    %819 = vst [vmem:[#allocation8 + $0x38] sm:$0xff] %v811
    // Predicated region
    $region34: #{projection_mlp_forward.1} parent=1 // pred_check
      _
    $region35: #{projection_mlp_forward.1} parent=1 // pred_check_branch
      %821 = sbr.rel (0) target = $region37
    $region36: #{projection_mlp_forward.1} parent=1 // pred_region
      %s823 = ssub.s32 1024, 1024
      %824 = vsyncadd [#allocation5], %s823
      %s825 = sshll.u32 [#allocation8], 4
      %s826 = int_to_ptr.vmem [resolvable:$true] %s825
      %831 = dma.vmem_to_hbm [thread:$0]  %s826, 1024, %s5, [#allocation5], 128, 128, 8
    $region37: #{projection_mlp_forward.1} parent=1 // pred_fallthru
      _
    // Predicated region
    $region38: #{projection_mlp_forward.1} parent=1 // pred_check
      _
    $region39: #{projection_mlp_forward.1} parent=1 // pred_check_branch
      %833 = sbr.rel (0) target = $region41
    $region40: #{projection_mlp_forward.1} parent=1 // pred_region
      %834 = dma.done [#allocation5], 1024
    $region41: #{projection_mlp_forward.1} parent=1 // pred_fallthru
      _
    %835 = vsyncpa [#allocation4], 1
    %836 = vsyncpa [#allocation7], 1
    %837 = vsyncpa [#allocation5], 1

</llo_original>
